<compile_context>
chip_gen: v6e
topology: v6e:2x2x1
jax: 0.10.0
libtpu: 0.0.40
codegen_flags: <defaults>
</compile_context>

<pallas_src>
import functools

import jax
import jax.numpy as jnp
from jax.experimental import pallas as pl
from jax.experimental.pallas import tpu as pltpu

LANE = 128          # TPU lane width
HID_PAD = 128       # hidden dims (128, 64, 32) zero-padded to this lane width
TILE_B_MAX = 1024   # max batch tile (multiple of 256: v6e/v7x MXU M; of 128: v5e)


def _round_up(n, m):
    return ((n + m - 1) // m) * m


def _pick_tile_b(B, tile_b_max=TILE_B_MAX):
    """Batch tile: big enough to amortize per-step overhead (~0.35us/step),
    small enough that cdiv(B, tile) >= 2 for mid/large batches (v7x megacore),
    always a multiple of 8 (sublane)."""
    if B <= 512:
        return _round_up(B, 8)                       # one tile covers the batch
    return min(tile_b_max, _round_up(pl.cdiv(B, 2), 256))


def mlp_kernel(x_ref, w1_ref, b1_ref, w2_ref, b2_ref, w3_ref, b3_ref,
               w4_ref, b4_ref, o_ref):
    # In-kernel bf16 cast of the x tile (f32 HBM read, no wrapper pre-pass).
    x = x_ref[...].astype(jnp.bfloat16)
    # Layer 1: Linear(input_dim, 128) + ReLU (bf16 operands, f32 accumulate).
    h = jnp.dot(x, w1_ref[...], preferred_element_type=jnp.float32)
    h = jnp.maximum(h + b1_ref[...], 0.0)
    # Layer 2: Linear(128, 64->padded 128) + ReLU.
    h = jnp.dot(h.astype(jnp.bfloat16), w2_ref[...],
                preferred_element_type=jnp.float32)
    h = jnp.maximum(h + b2_ref[...], 0.0)
    # Layer 3: Linear(64, 32 -> padded 128x128) + ReLU.
    h = jnp.dot(h.astype(jnp.bfloat16), w3_ref[...],
                preferred_element_type=jnp.float32)
    h = jnp.maximum(h + b3_ref[...], 0.0)
    # Layer 4: Linear(32 -> padded 128, num_classes -> padded 128), no activation.
    h = jnp.dot(h.astype(jnp.bfloat16), w4_ref[...],
                preferred_element_type=jnp.float32)
    o_ref[...] = (h + b4_ref[...]).astype(o_ref.dtype)     # bf16 lane-dense store


def prepare_params(params):
    """One-time prep: bf16 weights, zero-pad hidden dims to 128 lanes and the
    class dim to a multiple of 128.  Zero padding is exact: padded activation
    columns are ReLU(0 + 0) = 0 and multiply zero weight rows downstream."""
    num_classes = params["w4"].shape[1]
    nc_pad = _round_up(num_classes, LANE)
    w1 = params["w1"].astype(jnp.bfloat16)                                  # (in, 128)
    b1 = params["b1"].astype(jnp.float32)                                   # (1, 128)
    w2 = jnp.pad(params["w2"], ((0, 0), (0, HID_PAD - 64))).astype(jnp.bfloat16)
    b2 = jnp.pad(params["b2"], ((0, 0), (0, HID_PAD - 64))).astype(jnp.float32)
    w3 = jnp.pad(params["w3"], ((0, HID_PAD - 64), (0, HID_PAD - 32))
                 ).astype(jnp.bfloat16)
    b3 = jnp.pad(params["b3"], ((0, 0), (0, HID_PAD - 32))).astype(jnp.float32)
    w4 = jnp.pad(params["w4"], ((0, HID_PAD - 32), (0, nc_pad - num_classes))
                 ).astype(jnp.bfloat16)
    b4 = jnp.pad(params["b4"], ((0, 0), (0, nc_pad - num_classes))
                 ).astype(jnp.float32)
    return {"w1": w1, "b1": b1, "w2": w2, "b2": b2,
            "w3": w3, "b3": b3, "w4": w4, "b4": b4}


@functools.partial(jax.jit, static_argnames=("num_classes",))
def mlp_classifier_forward(x, prepped, num_classes):
    """x: (B, input_dim) f32.  prepped: output of prepare_params.  -> (B, num_classes) f32."""
    B, input_dim = x.shape
    nc_pad = prepped["w4"].shape[1]
    tile_b = _pick_tile_b(B)
    n_tiles = pl.cdiv(B, tile_b)

    args = (x, prepped["w1"], prepped["b1"], prepped["w2"], prepped["b2"],
            prepped["w3"], prepped["b3"], prepped["w4"], prepped["b4"])

    # x / out tile over the batch grid axis; weights & biases VMEM-resident
    # (constant index_map -> DMA'd once, reused every grid step).
    resident = lambda a: pl.BlockSpec(a.shape, lambda i: (0,) * a.ndim)
    in_specs = [pl.BlockSpec((tile_b, input_dim), lambda i: (i, 0))]
    in_specs += [resident(a) for a in args[1:]]
    out_spec = pl.BlockSpec((tile_b, nc_pad), lambda i: (i, 0))

    # Cost hint (f32 x read, bf16 weights, bf16 output write).
    flops = 2 * B * (input_dim * HID_PAD + HID_PAD * HID_PAD
                     + HID_PAD * HID_PAD + HID_PAD * nc_pad)
    weight_bytes = sum(int(a.size) * a.dtype.itemsize for a in args[1:])
    bytes_accessed = int(x.size) * x.dtype.itemsize + weight_bytes + B * nc_pad * 2

    # VMEM budget: double-buffered x/out tiles + (default double-buffered)
    # resident weights + f32 activation live set; capped at 64 MiB (v7x physical).
    x_tile_bytes = tile_b * input_dim * x.dtype.itemsize
    out_tile_bytes = tile_b * nc_pad * 2
    act_bytes = 4 * tile_b * HID_PAD * 4
    vmem_need = 2 * (x_tile_bytes + out_tile_bytes) + 2 * weight_bytes + act_bytes
    vmem_limit = int(min(max(2 * vmem_need, 32 * 1024 * 1024), 64 * 1024 * 1024))

    out_padded = pl.pallas_call(
        mlp_kernel,
        out_shape=jax.ShapeDtypeStruct((B, nc_pad), jnp.bfloat16),
        grid_spec=pltpu.PrefetchScalarGridSpec(
            num_scalar_prefetch=0,
            grid=(n_tiles,),
            in_specs=in_specs,
            out_specs=out_spec,
        ),
        compiler_params=pltpu.CompilerParams(
            dimension_semantics=("parallel",),
            vmem_limit_bytes=vmem_limit),
        cost_estimate=pl.CostEstimate(
            flops=flops, transcendentals=0, bytes_accessed=bytes_accessed),
    )(*args)

    # Padded class columns (== 0) must be dropped before any argmax/softmax.
    return out_padded[:, :num_classes].astype(jnp.float32)


def init_params(key, input_dim, num_classes):
    """PyTorch Linear default init: U(-1/sqrt(fan_in), 1/sqrt(fan_in))."""
    dims = [(input_dim, 128), (128, 64), (64, 32), (32, num_classes)]
    params = {}
    for i, (fin, fout) in enumerate(dims, start=1):
        key, kw, kb = jax.random.split(key, 3)
        bound = 1.0 / jnp.sqrt(jnp.float32(fin))
        params[f"w{i}"] = jax.random.uniform(
            kw, (fin, fout), jnp.float32, minval=-bound, maxval=bound)
        params[f"b{i}"] = jax.random.uniform(
            kb, (1, fout), jnp.float32, minval=-bound, maxval=bound)
    return params


def mlp_reference(x, params):
    h = x
    for i in range(1, 4):
        h = jnp.maximum(h @ params[f"w{i}"] + params[f"b{i}"], 0.0)
    return h @ params["w4"] + params["b4"]


if __name__ == "__main__":
    key = jax.random.PRNGKey(0)
    kx, kp = jax.random.split(key)

    batch, input_dim, num_classes = 8, 32, 10
    x = jax.random.normal(kx, (batch, input_dim), jnp.float32)
    params = init_params(kp, input_dim, num_classes)
    prepped = prepare_params(params)          # one-time weight prep (hoisted)

    out = mlp_classifier_forward(x, prepped, num_classes)
    out = jax.block_until_ready(out)

    ref = mlp_reference(x, params)
    assert out.shape == (batch, num_classes)
    assert out.dtype == jnp.float32
    # bf16 matmul operands / bf16 output with f32 accumulation -> loosened tolerance.
    assert jnp.allclose(out, ref, atol=2e-2, rtol=2e-2), (
        float(jnp.max(jnp.abs(out - ref))))

    print("KERNEL_OK")
</pallas_src>

<mosaic_0001>
module attributes {stable_mosaic.version = 11 : i64} {
  func.func @mlp_kernel(%arg0: i32, %arg1: memref<8x32xf32, #tpu.memory_space<vmem>>, %arg2: memref<32x128xbf16, #tpu.memory_space<vmem>>, %arg3: memref<1x128xf32, #tpu.memory_space<vmem>>, %arg4: memref<128x128xbf16, #tpu.memory_space<vmem>>, %arg5: memref<1x128xf32, #tpu.memory_space<vmem>>, %arg6: memref<128x128xbf16, #tpu.memory_space<vmem>>, %arg7: memref<1x128xf32, #tpu.memory_space<vmem>>, %arg8: memref<128x128xbf16, #tpu.memory_space<vmem>>, %arg9: memref<1x128xf32, #tpu.memory_space<vmem>>, %arg10: memref<8x128xbf16, #tpu.memory_space<vmem>>) attributes {dimension_semantics = [#tpu.dimension_semantics<parallel>], iteration_bounds = array<i64: 1>, scalar_prefetch = 0 : i64, scratch_operands = 0 : i64, tpu.core_type = #tpu.core_type<tc>, window_params = [{transform_indices = @transform_0, window_bounds = array<i64: 8, 32>}, {pipeline_mode = #tpu.pipeline_mode<synchronous>, transform_indices = @transform_1, window_bounds = array<i64: 32, 128>}, {pipeline_mode = #tpu.pipeline_mode<synchronous>, transform_indices = @transform_2, window_bounds = array<i64: 1, 128>}, {pipeline_mode = #tpu.pipeline_mode<synchronous>, transform_indices = @transform_3, window_bounds = array<i64: 128, 128>}, {pipeline_mode = #tpu.pipeline_mode<synchronous>, transform_indices = @transform_4, window_bounds = array<i64: 1, 128>}, {pipeline_mode = #tpu.pipeline_mode<synchronous>, transform_indices = @transform_5, window_bounds = array<i64: 128, 128>}, {pipeline_mode = #tpu.pipeline_mode<synchronous>, transform_indices = @transform_6, window_bounds = array<i64: 1, 128>}, {pipeline_mode = #tpu.pipeline_mode<synchronous>, transform_indices = @transform_7, window_bounds = array<i64: 128, 128>}, {pipeline_mode = #tpu.pipeline_mode<synchronous>, transform_indices = @transform_8, window_bounds = array<i64: 1, 128>}, {transform_indices = @transform_9, window_bounds = array<i64: 8, 128>}]} {
    %c0 = arith.constant 0 : index
    %c0_0 = arith.constant 0 : index
    %0 = vector.load %arg1[%c0, %c0_0] : memref<8x32xf32, #tpu.memory_space<vmem>>, vector<8x32xf32>
    %1 = arith.truncf %0 : vector<8x32xf32> to vector<8x32xbf16>
    %c0_1 = arith.constant 0 : index
    %c0_2 = arith.constant 0 : index
    %2 = vector.load %arg2[%c0_1, %c0_2] : memref<32x128xbf16, #tpu.memory_space<vmem>>, vector<32x128xbf16>
    %cst = arith.constant dense<0.000000e+00> : vector<8x128xf32>
    %3 = tpu.matmul %1, %2, %cst {dimension_numbers = #tpu.dot_dimension_numbers<[1], [0], [0], [1], [0, 0, 1, 1], [], []>} : vector<8x32xbf16>, vector<32x128xbf16>, vector<8x128xf32> -> vector<8x128xf32>
    %c0_3 = arith.constant 0 : index
    %c0_4 = arith.constant 0 : index
    %4 = vector.load %arg3[%c0_3, %c0_4] : memref<1x128xf32, #tpu.memory_space<vmem>>, vector<1x128xf32>
    %5 = vector.broadcast %4 : vector<1x128xf32> to vector<8x128xf32>
    %6 = arith.addf %3, %5 : vector<8x128xf32>
    %cst_5 = arith.constant 0.000000e+00 : f32
    %7 = vector.broadcast %cst_5 : f32 to vector<8x128xf32>
    %8 = arith.maximumf %6, %7 : vector<8x128xf32>
    %9 = arith.truncf %8 : vector<8x128xf32> to vector<8x128xbf16>
    %c0_6 = arith.constant 0 : index
    %c0_7 = arith.constant 0 : index
    %10 = vector.load %arg4[%c0_6, %c0_7] : memref<128x128xbf16, #tpu.memory_space<vmem>>, vector<128x128xbf16>
    %cst_8 = arith.constant dense<0.000000e+00> : vector<8x128xf32>
    %11 = tpu.matmul %9, %10, %cst_8 {dimension_numbers = #tpu.dot_dimension_numbers<[1], [0], [0], [1], [0, 0, 1, 1], [], []>} : vector<8x128xbf16>, vector<128x128xbf16>, vector<8x128xf32> -> vector<8x128xf32>
    %c0_9 = arith.constant 0 : index
    %c0_10 = arith.constant 0 : index
    %12 = vector.load %arg5[%c0_9, %c0_10] : memref<1x128xf32, #tpu.memory_space<vmem>>, vector<1x128xf32>
    %13 = vector.broadcast %12 : vector<1x128xf32> to vector<8x128xf32>
    %14 = arith.addf %11, %13 : vector<8x128xf32>
    %cst_11 = arith.constant 0.000000e+00 : f32
    %15 = vector.broadcast %cst_11 : f32 to vector<8x128xf32>
    %16 = arith.maximumf %14, %15 : vector<8x128xf32>
    %17 = arith.truncf %16 : vector<8x128xf32> to vector<8x128xbf16>
    %c0_12 = arith.constant 0 : index
    %c0_13 = arith.constant 0 : index
    %18 = vector.load %arg6[%c0_12, %c0_13] : memref<128x128xbf16, #tpu.memory_space<vmem>>, vector<128x128xbf16>
    %cst_14 = arith.constant dense<0.000000e+00> : vector<8x128xf32>
    %19 = tpu.matmul %17, %18, %cst_14 {dimension_numbers = #tpu.dot_dimension_numbers<[1], [0], [0], [1], [0, 0, 1, 1], [], []>} : vector<8x128xbf16>, vector<128x128xbf16>, vector<8x128xf32> -> vector<8x128xf32>
    %c0_15 = arith.constant 0 : index
    %c0_16 = arith.constant 0 : index
    %20 = vector.load %arg7[%c0_15, %c0_16] : memref<1x128xf32, #tpu.memory_space<vmem>>, vector<1x128xf32>
    %21 = vector.broadcast %20 : vector<1x128xf32> to vector<8x128xf32>
    %22 = arith.addf %19, %21 : vector<8x128xf32>
    %cst_17 = arith.constant 0.000000e+00 : f32
    %23 = vector.broadcast %cst_17 : f32 to vector<8x128xf32>
    %24 = arith.maximumf %22, %23 : vector<8x128xf32>
    %25 = arith.truncf %24 : vector<8x128xf32> to vector<8x128xbf16>
    %c0_18 = arith.constant 0 : index
    %c0_19 = arith.constant 0 : index
    %26 = vector.load %arg8[%c0_18, %c0_19] : memref<128x128xbf16, #tpu.memory_space<vmem>>, vector<128x128xbf16>
    %cst_20 = arith.constant dense<0.000000e+00> : vector<8x128xf32>
    %27 = tpu.matmul %25, %26, %cst_20 {dimension_numbers = #tpu.dot_dimension_numbers<[1], [0], [0], [1], [0, 0, 1, 1], [], []>} : vector<8x128xbf16>, vector<128x128xbf16>, vector<8x128xf32> -> vector<8x128xf32>
    %c0_21 = arith.constant 0 : index
    %c0_22 = arith.constant 0 : index
    %28 = vector.load %arg9[%c0_21, %c0_22] : memref<1x128xf32, #tpu.memory_space<vmem>>, vector<1x128xf32>
    %29 = vector.broadcast %28 : vector<1x128xf32> to vector<8x128xf32>
    %30 = arith.addf %27, %29 : vector<8x128xf32>
    %31 = arith.truncf %30 : vector<8x128xf32> to vector<8x128xbf16>
    %c0_23 = arith.constant 0 : index
    %c0_24 = arith.constant 0 : index
    %32 = vector.load %arg10[%c0_23, %c0_24] : memref<8x128xbf16, #tpu.memory_space<vmem>>, vector<8x128xbf16>
    tpu.vector_store %arg10[%c0_23, %c0_24], %31 {strides = array<i32>} : memref<8x128xbf16, #tpu.memory_space<vmem>>, vector<8x128xbf16>,
    return
  }
  func.func @transform_0(%arg0: i32) -> (i32, i32) {
    %c0_i32 = arith.constant 0 : i32
    %c0_i32_0 = arith.constant 0 : i32
    return %arg0, %c0_i32 : i32, i32
  }
  func.func @transform_1(%arg0: i32) -> (i32, i32) {
    %c0_i32 = arith.constant 0 : i32
    %c0_i32_0 = arith.constant 0 : i32
    %c0_i32_1 = arith.constant 0 : i32
    return %c0_i32, %c0_i32_0 : i32, i32
  }
  func.func @transform_2(%arg0: i32) -> (i32, i32) {
    %c0_i32 = arith.constant 0 : i32
    %c0_i32_0 = arith.constant 0 : i32
    %c0_i32_1 = arith.constant 0 : i32
    return %c0_i32, %c0_i32_0 : i32, i32
  }
  func.func @transform_3(%arg0: i32) -> (i32, i32) {
    %c0_i32 = arith.constant 0 : i32
    %c0_i32_0 = arith.constant 0 : i32
    %c0_i32_1 = arith.constant 0 : i32
    return %c0_i32, %c0_i32_0 : i32, i32
  }
  func.func @transform_4(%arg0: i32) -> (i32, i32) {
    %c0_i32 = arith.constant 0 : i32
    %c0_i32_0 = arith.constant 0 : i32
    %c0_i32_1 = arith.constant 0 : i32
    return %c0_i32, %c0_i32_0 : i32, i32
  }
  func.func @transform_5(%arg0: i32) -> (i32, i32) {
    %c0_i32 = arith.constant 0 : i32
    %c0_i32_0 = arith.constant 0 : i32
    %c0_i32_1 = arith.constant 0 : i32
    return %c0_i32, %c0_i32_0 : i32, i32
  }
  func.func @transform_6(%arg0: i32) -> (i32, i32) {
    %c0_i32 = arith.constant 0 : i32
    %c0_i32_0 = arith.constant 0 : i32
    %c0_i32_1 = arith.constant 0 : i32
    return %c0_i32, %c0_i32_0 : i32, i32
  }
  func.func @transform_7(%arg0: i32) -> (i32, i32) {
    %c0_i32 = arith.constant 0 : i32
    %c0_i32_0 = arith.constant 0 : i32
    %c0_i32_1 = arith.constant 0 : i32
    return %c0_i32, %c0_i32_0 : i32, i32
  }
  func.func @transform_8(%arg0: i32) -> (i32, i32) {
    %c0_i32 = arith.constant 0 : i32
    %c0_i32_0 = arith.constant 0 : i32
    %c0_i32_1 = arith.constant 0 : i32
    return %c0_i32, %c0_i32_0 : i32, i32
  }
  func.func @transform_9(%arg0: i32) -> (i32, i32) {
    %c0_i32 = arith.constant 0 : i32
    %c0_i32_0 = arith.constant 0 : i32
    return %arg0, %c0_i32 : i32, i32
  }
}

</mosaic_0001>

<llo_original>
// kernel: mlp_classifier_forward.1
$region0: #{mlp_classifier_forward.1}
  #allocation0 [shape = 'u32[]', space=smem, size = 0x4, offset = 0x4, fixed_abs, tag = 'smem constant byte address 0x4 - core index']
  #allocation1 [shape = 'u32[144,128]{1,0:T(1,128)}', space=vmem, size = 0x12000, scoped, tag = 'internal scratch']
  %s0 = inlined_call_operand.hbm [shape: f32[8,32], index: 0, kind: input, shape index: {}]
  %s1 = inlined_call_operand.hbm [shape: bf16[32,128], index: 1, kind: input, shape index: {}]
  %s2 = inlined_call_operand.vmem [shape: f32[1,128], index: 2, kind: input, shape index: {}]
  %s3 = inlined_call_operand.hbm [shape: bf16[128,128], index: 3, kind: input, shape index: {}]
  %s4 = inlined_call_operand.vmem [shape: f32[1,128], index: 4, kind: input, shape index: {}]
  %s5 = inlined_call_operand.hbm [shape: bf16[128,128], index: 5, kind: input, shape index: {}]
  %s6 = inlined_call_operand.vmem [shape: f32[1,128], index: 6, kind: input, shape index: {}]
  %s7 = inlined_call_operand.hbm [shape: bf16[128,128], index: 7, kind: input, shape index: {}]
  %s8 = inlined_call_operand.vmem [shape: f32[1,128], index: 8, kind: input, shape index: {}]
  %s9 = inlined_call_operand.vmem [shape: bf16[8,128], index: 9, kind: output, shape index: {}]
  %s10 = sld [smem:[#allocation0]]
  $region66: #{mlp_classifier_forward.1} parent=0
    _
  %s12 = ssub.s32 1, %s10
  %s13 = scalar_select 0, %s12, %s10
  $region1: #{mlp_classifier_forward.1} parent=0
    #allocation2 [shape = 'u8[4096]{0}', space=vmem, size = 0x1000, scoped, tag = 'input window, operand 0, single buffered']
    #allocation3 [shape = 's32[1]{0}', space=sflag, size = 0x4, scoped, tag = 'scoped memory for mlp_classifier_forward.1']
    #allocation4 [shape = 'u8[8192]{0}', space=vmem, size = 0x2000, scoped, tag = 'input window, operand 1, single buffered']
    #allocation5 [shape = 's32[1]{0}', space=sflag, size = 0x4, scoped, tag = 'scoped memory for mlp_classifier_forward.1']
    #allocation6 [shape = 'u8[32768]{0}', space=vmem, size = 0x8000, scoped, tag = 'input window, operand 3, single buffered']
    #allocation7 [shape = 'u8[32768]{0}', space=vmem, size = 0x8000, scoped, tag = 'input window, operand 5, single buffered']
    #allocation8 [shape = 's32[1]{0}', space=sflag, size = 0x4, scoped, tag = 'scoped memory for mlp_classifier_forward.1']
    #allocation9 [shape = 'u8[32768]{0}', space=vmem, size = 0x8000, scoped, tag = 'input window, operand 7, single buffered']
    %14 = vsyncpa [#allocation3], 0
    %15 = vsyncpa [#allocation5], 0
    %16 = vsyncpa [#allocation8], 0
    // Predicated region
    $region2: #{mlp_classifier_forward.1} parent=1 // pred_check
      _
    $region3: #{mlp_classifier_forward.1} parent=1 // pred_check_branch
      %18 = sbr.rel (0) target = $region5
    $region4: #{mlp_classifier_forward.1} parent=1 // pred_region
      %s20 = ssub.s32 128, 128
      %21 = vsyncadd [#allocation3], %s20
      %s23 = sshll.u32 [#allocation2], 4
      %s24 = int_to_ptr.vmem [resolvable:$true] %s23
      %26 = dma.hbm_to_vmem [thread:$0]  %s0, 128, %s24, [#allocation3]
    $region5: #{mlp_classifier_forward.1} parent=1 // pred_fallthru
      _
    // Predicated region
    $region6: #{mlp_classifier_forward.1} parent=1 // pred_check
      _
    $region7: #{mlp_classifier_forward.1} parent=1 // pred_check_branch
      %28 = sbr.rel (0) target = $region9
    $region8: #{mlp_classifier_forward.1} parent=1 // pred_region
      %s30 = ssub.s32 256, 256
      %31 = vsyncadd [#allocation5], %s30
      %s32 = sshll.u32 [#allocation4], 4
      %s33 = int_to_ptr.vmem [resolvable:$true] %s32
      %38 = dma.hbm_to_vmem [thread:$0]  %s1, 256, %s33, [#allocation5], 64, 64, 4
    $region9: #{mlp_classifier_forward.1} parent=1 // pred_fallthru
      _
    // Predicated region
    $region10: #{mlp_classifier_forward.1} parent=1 // pred_check
      _
    $region11: #{mlp_classifier_forward.1} parent=1 // pred_check_branch
      %40 = sbr.rel (0) target = $region13
    $region12: #{mlp_classifier_forward.1} parent=1 // pred_region
      _
    $region13: #{mlp_classifier_forward.1} parent=1 // pred_fallthru
      _
    // Predicated region
    $region14: #{mlp_classifier_forward.1} parent=1 // pred_check
      _
    $region15: #{mlp_classifier_forward.1} parent=1 // pred_check_branch
      %42 = sbr.rel (0) target = $region17
    $region16: #{mlp_classifier_forward.1} parent=1 // pred_region
      %s44 = ssub.s32 1024, 1024
      %45 = vsyncadd [#allocation5], %s44
      %s46 = sshll.u32 [#allocation6], 4
      %s47 = int_to_ptr.vmem [resolvable:$true] %s46
      %52 = dma.hbm_to_vmem [thread:$0]  %s3, 1024, %s47, [#allocation5], 64, 64, 4
    $region17: #{mlp_classifier_forward.1} parent=1 // pred_fallthru
      _
    // Predicated region
    $region18: #{mlp_classifier_forward.1} parent=1 // pred_check
      _
    $region19: #{mlp_classifier_forward.1} parent=1 // pred_check_branch
      %54 = sbr.rel (0) target = $region21
    $region20: #{mlp_classifier_forward.1} parent=1 // pred_region
      _
    $region21: #{mlp_classifier_forward.1} parent=1 // pred_fallthru
      _
    // Predicated region
    $region22: #{mlp_classifier_forward.1} parent=1 // pred_check
      _
    $region23: #{mlp_classifier_forward.1} parent=1 // pred_check_branch
      %56 = sbr.rel (0) target = $region25
    $region24: #{mlp_classifier_forward.1} parent=1 // pred_region
      %s58 = ssub.s32 1024, 1024
      %59 = vsyncadd [#allocation8], %s58
      %s60 = sshll.u32 [#allocation7], 4
      %s61 = int_to_ptr.vmem [resolvable:$true] %s60
      %66 = dma.hbm_to_vmem [thread:$0]  %s5, 1024, %s61, [#allocation8], 64, 64, 4
    $region25: #{mlp_classifier_forward.1} parent=1 // pred_fallthru
      _
    // Predicated region
    $region26: #{mlp_classifier_forward.1} parent=1 // pred_check
      _
    $region27: #{mlp_classifier_forward.1} parent=1 // pred_check_branch
      %68 = sbr.rel (0) target = $region29
    $region28: #{mlp_classifier_forward.1} parent=1 // pred_region
      _
    $region29: #{mlp_classifier_forward.1} parent=1 // pred_fallthru
      _
    // Predicated region
    $region30: #{mlp_classifier_forward.1} parent=1 // pred_check
      _
    $region31: #{mlp_classifier_forward.1} parent=1 // pred_check_branch
      %70 = sbr.rel (0) target = $region33
    $region32: #{mlp_classifier_forward.1} parent=1 // pred_region
      %s72 = ssub.s32 1024, 1024
      %73 = vsyncadd [#allocation8], %s72
      %s74 = sshll.u32 [#allocation9], 4
      %s75 = int_to_ptr.vmem [resolvable:$true] %s74
      %80 = dma.hbm_to_vmem [thread:$0]  %s7, 1024, %s75, [#allocation8], 64, 64, 4
    $region33: #{mlp_classifier_forward.1} parent=1 // pred_fallthru
      _
    // Predicated region
    $region34: #{mlp_classifier_forward.1} parent=1 // pred_check
      _
    $region35: #{mlp_classifier_forward.1} parent=1 // pred_check_branch
      %82 = sbr.rel (0) target = $region37
    $region36: #{mlp_classifier_forward.1} parent=1 // pred_region
      _
    $region37: #{mlp_classifier_forward.1} parent=1 // pred_fallthru
      _
    // Predicated region
    $region38: #{mlp_classifier_forward.1} parent=1 // pred_check
      _
    $region39: #{mlp_classifier_forward.1} parent=1 // pred_check_branch
      %84 = sbr.rel (0) target = $region41
    $region40: #{mlp_classifier_forward.1} parent=1 // pred_region
      %85 = dma.done [#allocation3], 128
    $region41: #{mlp_classifier_forward.1} parent=1 // pred_fallthru
      _
    // Predicated region
    $region42: #{mlp_classifier_forward.1} parent=1 // pred_check
      _
    $region43: #{mlp_classifier_forward.1} parent=1 // pred_check_branch
      %87 = sbr.rel (0) target = $region45
    $region44: #{mlp_classifier_forward.1} parent=1 // pred_region
      %88 = dma.done [#allocation5], 256
    $region45: #{mlp_classifier_forward.1} parent=1 // pred_fallthru
      _
    // Predicated region
    $region46: #{mlp_classifier_forward.1} parent=1 // pred_check
      _
    $region47: #{mlp_classifier_forward.1} parent=1 // pred_check_branch
      %90 = sbr.rel (0) target = $region49
    $region48: #{mlp_classifier_forward.1} parent=1 // pred_region
      %91 = dma.done [#allocation5], 1024
    $region49: #{mlp_classifier_forward.1} parent=1 // pred_fallthru
      _
    // Predicated region
    $region50: #{mlp_classifier_forward.1} parent=1 // pred_check
      _
    $region51: #{mlp_classifier_forward.1} parent=1 // pred_check_branch
      %93 = sbr.rel (0) target = $region53
    $region52: #{mlp_classifier_forward.1} parent=1 // pred_region
      %94 = dma.done [#allocation8], 1024
    $region53: #{mlp_classifier_forward.1} parent=1 // pred_fallthru
      _
    // Predicated region
    $region54: #{mlp_classifier_forward.1} parent=1 // pred_check
      _
    $region55: #{mlp_classifier_forward.1} parent=1 // pred_check_branch
      %96 = sbr.rel (0) target = $region57
    $region56: #{mlp_classifier_forward.1} parent=1 // pred_region
      %97 = dma.done [#allocation8], 1024
    $region57: #{mlp_classifier_forward.1} parent=1 // pred_fallthru
      _
    %v99 = vld [vmem:[#allocation2] sm:$0xff]
    %v100 = vpack.c.bf16 %v99, %v99
    %v101 = vld [vmem:[#allocation4] sm:$0xf]
    %v102 = vld [vmem:[#allocation4 + $0x4] sm:$0xf]
    %v103 = vld [vmem:[#allocation4 + $0x8] sm:$0xf]
    %v104 = vld [vmem:[#allocation4 + $0xc] sm:$0xf]
    %v105 = vld [vmem:[%s2] sm:$0x1]
    %v107 = vlaneseq
    %v108 = vshrl.u32 %v107, 7
    %v109 = vsub.s32 0, %v108
    %v110 = vrot.slane %v105, %v109
    %v116 = vunpack.c.l.b16 %v101
    %v117 = vunpack.c.l.b16 %v102
    %v118 = vunpack.c.l.b16 %v103
    %v119 = vunpack.c.l.b16 %v104
    %v120 = vpack.c.b16 %v117, %v116
    %v121 = vpack.c.b16 %v119, %v118
    %vm124 = vcmask 261120
    %v126 = vsel %vm124, %v100, 0
    %128 = vmatprep.subr.bf16.mxu0 0
    %129 = vmatpush1.bf16.msra.mxu0 0
    %130 = vmatprep.subr.bf16.mxu0 0
    %131 = vmatpush1.bf16.msra.mxu0 0
    %132 = vmatprep.subr.bf16.mxu0 0
    %133 = vmatpush1.bf16.msra.mxu0 0
    %134 = vmatprep.subr.bf16.mxu0 0
    %135 = vmatpush1.bf16.msra.mxu0 0
    %136 = vmatprep.subr.bf16.mxu0 0
    %137 = vmatpush1.bf16.msra.mxu0 0
    %138 = vmatprep.subr.bf16.mxu0 0
    %139 = vmatpush1.bf16.msra.mxu0 0
    %140 = vmatprep.subr.bf16.mxu0 0
    %141 = vmatpush1.bf16.msra.mxu0 %v121
    %142 = vmatprep.subr.bf16.mxu0 0
    %143 = vmatpush1.bf16.msra.mxu0 %v120
    %144 = vmatprep.subr.bf16.mxu0 0
    %145 = vmatpush2.bf16.msra.mxu0 0
    %146 = vmatprep.subr.bf16.mxu0 0
    %147 = vmatpush2.bf16.msra.mxu0 0
    %148 = vmatprep.subr.bf16.mxu0 0
    %149 = vmatpush2.bf16.msra.mxu0 0
    %150 = vmatprep.subr.bf16.mxu0 0
    %151 = vmatpush2.bf16.msra.mxu0 0
    %152 = vmatprep.subr.bf16.mxu0 0
    %153 = vmatpush2.bf16.msra.mxu0 0
    %154 = vmatprep.subr.bf16.mxu0 0
    %155 = vmatpush2.bf16.msra.mxu0 0
    %156 = vmatprep.subr.bf16.mxu0 0
    %157 = vmatpush2.bf16.msra.mxu0 0
    %158 = vmatprep.subr.bf16.mxu0 0
    %159 = vmatpush2.bf16.msra.mxu0 0
    %160 = vmatprep.mubr.bf16.mxu0 0
    %161 = vmatmul.mubr.bf16.gmra.mxu0 %v126
    %v162 = vpop.f32.mrf.mxu0
    %v163 = vadd.f32 %v110, %v162
    %v164 = vpop.f32.mrf.mxu0
    %v165 = vpop.f32.mrf.mxu0
    %v166 = vpop.f32.mrf.mxu0
    %167 = vdwg.mxu0
    %v168 = vmax.f32 %v163, 0.0
    %v169 = vpack.c.bf16 %v168, %v168
    %v170 = vld [vmem:[#allocation6] sm:$0xf]
    %v171 = vld [vmem:[#allocation6 + $0x4] sm:$0xf]
    %v172 = vld [vmem:[#allocation6 + $0x8] sm:$0xf]
    %v173 = vld [vmem:[#allocation6 + $0xc] sm:$0xf]
    %v174 = vld [vmem:[#allocation6 + $0x10] sm:$0xf]
    %v175 = vld [vmem:[#allocation6 + $0x14] sm:$0xf]
    %v176 = vld [vmem:[#allocation6 + $0x18] sm:$0xf]
    %v177 = vld [vmem:[#allocation6 + $0x1c] sm:$0xf]
    %v178 = vld [vmem:[#allocation6 + $0x20] sm:$0xf]
    %v179 = vld [vmem:[#allocation6 + $0x24] sm:$0xf]
    %v180 = vld [vmem:[#allocation6 + $0x28] sm:$0xf]
    %v181 = vld [vmem:[#allocation6 + $0x2c] sm:$0xf]
    %v182 = vld [vmem:[#allocation6 + $0x30] sm:$0xf]
    %v183 = vld [vmem:[#allocation6 + $0x34] sm:$0xf]
    %v184 = vld [vmem:[#allocation6 + $0x38] sm:$0xf]
    %v185 = vld [vmem:[#allocation6 + $0x3c] sm:$0xf]
    %v186 = vld [vmem:[%s4] sm:$0x1]
    %v188 = vlaneseq
    %v189 = vshrl.u32 %v188, 7
    %v190 = vsub.s32 0, %v189
    %v191 = vrot.slane %v186, %v190
    %v209 = vunpack.c.l.b16 %v170
    %v210 = vunpack.c.l.b16 %v171
    %v211 = vunpack.c.l.b16 %v172
    %v212 = vunpack.c.l.b16 %v173
    %v213 = vunpack.c.l.b16 %v174
    %v214 = vunpack.c.l.b16 %v175
    %v215 = vunpack.c.l.b16 %v176
    %v216 = vunpack.c.l.b16 %v177
    %v217 = vunpack.c.l.b16 %v178
    %v218 = vunpack.c.l.b16 %v179
    %v219 = vunpack.c.l.b16 %v180
    %v220 = vunpack.c.l.b16 %v181
    %v221 = vunpack.c.l.b16 %v182
    %v222 = vunpack.c.l.b16 %v183
    %v223 = vunpack.c.l.b16 %v184
    %v224 = vunpack.c.l.b16 %v185
    %v225 = vpack.c.b16 %v210, %v209
    %v226 = vpack.c.b16 %v212, %v211
    %v227 = vpack.c.b16 %v214, %v213
    %v228 = vpack.c.b16 %v216, %v215
    %v229 = vpack.c.b16 %v218, %v217
    %v230 = vpack.c.b16 %v220, %v219
    %v231 = vpack.c.b16 %v222, %v221
    %v232 = vpack.c.b16 %v224, %v223
    %241 = vmatprep.subr.bf16.mxu0 0
    %242 = vmatpush1.bf16.msra.mxu0 %v232
    %243 = vmatprep.subr.bf16.mxu0 0
    %244 = vmatpush1.bf16.msra.mxu0 %v231
    %245 = vmatprep.subr.bf16.mxu0 0
    %246 = vmatpush1.bf16.msra.mxu0 %v230
    %247 = vmatprep.subr.bf16.mxu0 0
    %248 = vmatpush1.bf16.msra.mxu0 %v229
    %249 = vmatprep.subr.bf16.mxu0 0
    %250 = vmatpush1.bf16.msra.mxu0 %v228
    %251 = vmatprep.subr.bf16.mxu0 0
    %252 = vmatpush1.bf16.msra.mxu0 %v227
    %253 = vmatprep.subr.bf16.mxu0 0
    %254 = vmatpush1.bf16.msra.mxu0 %v226
    %255 = vmatprep.subr.bf16.mxu0 0
    %256 = vmatpush1.bf16.msra.mxu0 %v225
    %257 = vmatprep.subr.bf16.mxu0 0
    %258 = vmatpush2.bf16.msra.mxu0 0
    %259 = vmatprep.subr.bf16.mxu0 0
    %260 = vmatpush2.bf16.msra.mxu0 0
    %261 = vmatprep.subr.bf16.mxu0 0
    %262 = vmatpush2.bf16.msra.mxu0 0
    %263 = vmatprep.subr.bf16.mxu0 0
    %264 = vmatpush2.bf16.msra.mxu0 0
    %265 = vmatprep.subr.bf16.mxu0 0
    %266 = vmatpush2.bf16.msra.mxu0 0
    %267 = vmatprep.subr.bf16.mxu0 0
    %268 = vmatpush2.bf16.msra.mxu0 0
    %269 = vmatprep.subr.bf16.mxu0 0
    %270 = vmatpush2.bf16.msra.mxu0 0
    %271 = vmatprep.subr.bf16.mxu0 0
    %272 = vmatpush2.bf16.msra.mxu0 0
    %273 = vmatprep.mubr.bf16.mxu0 0
    %274 = vmatmul.mubr.bf16.gmra.mxu0 %v169
    %v275 = vpop.f32.mrf.mxu0
    %v276 = vadd.f32 %v191, %v275
    %v277 = vpop.f32.mrf.mxu0
    %v278 = vpop.f32.mrf.mxu0
    %v279 = vpop.f32.mrf.mxu0
    %280 = vdwg.mxu0
    %v281 = vmax.f32 %v276, 0.0
    %v282 = vpack.c.bf16 %v281, %v281
    %v283 = vld [vmem:[#allocation7] sm:$0xf]
    %v284 = vld [vmem:[#allocation7 + $0x4] sm:$0xf]
    %v285 = vld [vmem:[#allocation7 + $0x8] sm:$0xf]
    %v286 = vld [vmem:[#allocation7 + $0xc] sm:$0xf]
    %v287 = vld [vmem:[#allocation7 + $0x10] sm:$0xf]
    %v288 = vld [vmem:[#allocation7 + $0x14] sm:$0xf]
    %v289 = vld [vmem:[#allocation7 + $0x18] sm:$0xf]
    %v290 = vld [vmem:[#allocation7 + $0x1c] sm:$0xf]
    %v291 = vld [vmem:[#allocation7 + $0x20] sm:$0xf]
    %v292 = vld [vmem:[#allocation7 + $0x24] sm:$0xf]
    %v293 = vld [vmem:[#allocation7 + $0x28] sm:$0xf]
    %v294 = vld [vmem:[#allocation7 + $0x2c] sm:$0xf]
    %v295 = vld [vmem:[#allocation7 + $0x30] sm:$0xf]
    %v296 = vld [vmem:[#allocation7 + $0x34] sm:$0xf]
    %v297 = vld [vmem:[#allocation7 + $0x38] sm:$0xf]
    %v298 = vld [vmem:[#allocation7 + $0x3c] sm:$0xf]
    %v299 = vld [vmem:[%s6] sm:$0x1]
    %v301 = vlaneseq
    %v302 = vshrl.u32 %v301, 7
    %v303 = vsub.s32 0, %v302
    %v304 = vrot.slane %v299, %v303
    %v322 = vunpack.c.l.b16 %v283
    %v323 = vunpack.c.l.b16 %v284
    %v324 = vunpack.c.l.b16 %v285
    %v325 = vunpack.c.l.b16 %v286
    %v326 = vunpack.c.l.b16 %v287
    %v327 = vunpack.c.l.b16 %v288
    %v328 = vunpack.c.l.b16 %v289
    %v329 = vunpack.c.l.b16 %v290
    %v330 = vunpack.c.l.b16 %v291
    %v331 = vunpack.c.l.b16 %v292
    %v332 = vunpack.c.l.b16 %v293
    %v333 = vunpack.c.l.b16 %v294
    %v334 = vunpack.c.l.b16 %v295
    %v335 = vunpack.c.l.b16 %v296
    %v336 = vunpack.c.l.b16 %v297
    %v337 = vunpack.c.l.b16 %v298
    %v338 = vpack.c.b16 %v323, %v322
    %v339 = vpack.c.b16 %v325, %v324
    %v340 = vpack.c.b16 %v327, %v326
    %v341 = vpack.c.b16 %v329, %v328
    %v342 = vpack.c.b16 %v331, %v330
    %v343 = vpack.c.b16 %v333, %v332
    %v344 = vpack.c.b16 %v335, %v334
    %v345 = vpack.c.b16 %v337, %v336
    %354 = vmatprep.subr.bf16.mxu0 0
    %355 = vmatpush1.bf16.msra.mxu0 %v345
    %356 = vmatprep.subr.bf16.mxu0 0
    %357 = vmatpush1.bf16.msra.mxu0 %v344
    %358 = vmatprep.subr.bf16.mxu0 0
    %359 = vmatpush1.bf16.msra.mxu0 %v343
    %360 = vmatprep.subr.bf16.mxu0 0
    %361 = vmatpush1.bf16.msra.mxu0 %v342
    %362 = vmatprep.subr.bf16.mxu0 0
    %363 = vmatpush1.bf16.msra.mxu0 %v341
    %364 = vmatprep.subr.bf16.mxu0 0
    %365 = vmatpush1.bf16.msra.mxu0 %v340
    %366 = vmatprep.subr.bf16.mxu0 0
    %367 = vmatpush1.bf16.msra.mxu0 %v339
    %368 = vmatprep.subr.bf16.mxu0 0
    %369 = vmatpush1.bf16.msra.mxu0 %v338
    %370 = vmatprep.subr.bf16.mxu0 0
    %371 = vmatpush2.bf16.msra.mxu0 0
    %372 = vmatprep.subr.bf16.mxu0 0
    %373 = vmatpush2.bf16.msra.mxu0 0
    %374 = vmatprep.subr.bf16.mxu0 0
    %375 = vmatpush2.bf16.msra.mxu0 0
    %376 = vmatprep.subr.bf16.mxu0 0
    %377 = vmatpush2.bf16.msra.mxu0 0
    %378 = vmatprep.subr.bf16.mxu0 0
    %379 = vmatpush2.bf16.msra.mxu0 0
    %380 = vmatprep.subr.bf16.mxu0 0
    %381 = vmatpush2.bf16.msra.mxu0 0
    %382 = vmatprep.subr.bf16.mxu0 0
    %383 = vmatpush2.bf16.msra.mxu0 0
    %384 = vmatprep.subr.bf16.mxu0 0
    %385 = vmatpush2.bf16.msra.mxu0 0
    %386 = vmatprep.mubr.bf16.mxu0 0
    %387 = vmatmul.mubr.bf16.gmra.mxu0 %v282
    %v388 = vpop.f32.mrf.mxu0
    %v389 = vadd.f32 %v304, %v388
    %v390 = vpop.f32.mrf.mxu0
    %v391 = vpop.f32.mrf.mxu0
    %v392 = vpop.f32.mrf.mxu0
    %393 = vdwg.mxu0
    %v394 = vmax.f32 %v389, 0.0
    %v395 = vpack.c.bf16 %v394, %v394
    %v396 = vld [vmem:[#allocation9] sm:$0xf]
    %v397 = vld [vmem:[#allocation9 + $0x4] sm:$0xf]
    %v398 = vld [vmem:[#allocation9 + $0x8] sm:$0xf]
    %v399 = vld [vmem:[#allocation9 + $0xc] sm:$0xf]
    %v400 = vld [vmem:[#allocation9 + $0x10] sm:$0xf]
    %v401 = vld [vmem:[#allocation9 + $0x14] sm:$0xf]
    %v402 = vld [vmem:[#allocation9 + $0x18] sm:$0xf]
    %v403 = vld [vmem:[#allocation9 + $0x1c] sm:$0xf]
    %v404 = vld [vmem:[#allocation9 + $0x20] sm:$0xf]
    %v405 = vld [vmem:[#allocation9 + $0x24] sm:$0xf]
    %v406 = vld [vmem:[#allocation9 + $0x28] sm:$0xf]
    %v407 = vld [vmem:[#allocation9 + $0x2c] sm:$0xf]
    %v408 = vld [vmem:[#allocation9 + $0x30] sm:$0xf]
    %v409 = vld [vmem:[#allocation9 + $0x34] sm:$0xf]
    %v410 = vld [vmem:[#allocation9 + $0x38] sm:$0xf]
    %v411 = vld [vmem:[#allocation9 + $0x3c] sm:$0xf]
    %v412 = vld [vmem:[%s8] sm:$0x1]
    %v414 = vlaneseq
    %v415 = vshrl.u32 %v414, 7
    %v416 = vsub.s32 0, %v415
    %v417 = vrot.slane %v412, %v416
    %v435 = vunpack.c.l.b16 %v396
    %v436 = vunpack.c.l.b16 %v397
    %v437 = vunpack.c.l.b16 %v398
    %v438 = vunpack.c.l.b16 %v399
    %v439 = vunpack.c.l.b16 %v400
    %v440 = vunpack.c.l.b16 %v401
    %v441 = vunpack.c.l.b16 %v402
    %v442 = vunpack.c.l.b16 %v403
    %v443 = vunpack.c.l.b16 %v404
    %v444 = vunpack.c.l.b16 %v405
    %v445 = vunpack.c.l.b16 %v406
    %v446 = vunpack.c.l.b16 %v407
    %v447 = vunpack.c.l.b16 %v408
    %v448 = vunpack.c.l.b16 %v409
    %v449 = vunpack.c.l.b16 %v410
    %v450 = vunpack.c.l.b16 %v411
    %v451 = vpack.c.b16 %v436, %v435
    %v452 = vpack.c.b16 %v438, %v437
    %v453 = vpack.c.b16 %v440, %v439
    %v454 = vpack.c.b16 %v442, %v441
    %v455 = vpack.c.b16 %v444, %v443
    %v456 = vpack.c.b16 %v446, %v445
    %v457 = vpack.c.b16 %v448, %v447
    %v458 = vpack.c.b16 %v450, %v449
    %467 = vmatprep.subr.bf16.mxu0 0
    %468 = vmatpush1.bf16.msra.mxu0 %v458
    %469 = vmatprep.subr.bf16.mxu0 0
    %470 = vmatpush1.bf16.msra.mxu0 %v457
    %471 = vmatprep.subr.bf16.mxu0 0
    %472 = vmatpush1.bf16.msra.mxu0 %v456
    %473 = vmatprep.subr.bf16.mxu0 0
    %474 = vmatpush1.bf16.msra.mxu0 %v455
    %475 = vmatprep.subr.bf16.mxu0 0
    %476 = vmatpush1.bf16.msra.mxu0 %v454
    %477 = vmatprep.subr.bf16.mxu0 0
    %478 = vmatpush1.bf16.msra.mxu0 %v453
    %479 = vmatprep.subr.bf16.mxu0 0
    %480 = vmatpush1.bf16.msra.mxu0 %v452
    %481 = vmatprep.subr.bf16.mxu0 0
    %482 = vmatpush1.bf16.msra.mxu0 %v451
    %483 = vmatprep.subr.bf16.mxu0 0
    %484 = vmatpush2.bf16.msra.mxu0 0
    %485 = vmatprep.subr.bf16.mxu0 0
    %486 = vmatpush2.bf16.msra.mxu0 0
    %487 = vmatprep.subr.bf16.mxu0 0
    %488 = vmatpush2.bf16.msra.mxu0 0
    %489 = vmatprep.subr.bf16.mxu0 0
    %490 = vmatpush2.bf16.msra.mxu0 0
    %491 = vmatprep.subr.bf16.mxu0 0
    %492 = vmatpush2.bf16.msra.mxu0 0
    %493 = vmatprep.subr.bf16.mxu0 0
    %494 = vmatpush2.bf16.msra.mxu0 0
    %495 = vmatprep.subr.bf16.mxu0 0
    %496 = vmatpush2.bf16.msra.mxu0 0
    %497 = vmatprep.subr.bf16.mxu0 0
    %498 = vmatpush2.bf16.msra.mxu0 0
    %499 = vmatprep.mubr.bf16.mxu0 0
    %500 = vmatmul.mubr.bf16.gmra.mxu0 %v395
    %v501 = vpop.f32.mrf.mxu0
    %v502 = vadd.f32 %v417, %v501
    %v503 = vpop.f32.mrf.mxu0
    %v504 = vpop.f32.mrf.mxu0
    %v505 = vpop.f32.mrf.mxu0
    %506 = vdwg.mxu0
    %v507 = vpack.c.bf16 %v502, %v502
    %508 = vst [vmem:[%s9] sm:$0xf] %v507
    // Predicated region
    $region58: #{mlp_classifier_forward.1} parent=1 // pred_check
      _
    $region59: #{mlp_classifier_forward.1} parent=1 // pred_check_branch
      %510 = sbr.rel (0) target = $region61
    $region60: #{mlp_classifier_forward.1} parent=1 // pred_region
      _
    $region61: #{mlp_classifier_forward.1} parent=1 // pred_fallthru
      _
    // Predicated region
    $region62: #{mlp_classifier_forward.1} parent=1 // pred_check
      _
    $region63: #{mlp_classifier_forward.1} parent=1 // pred_check_branch
      %512 = sbr.rel (0) target = $region65
    $region64: #{mlp_classifier_forward.1} parent=1 // pred_region
      _
    $region65: #{mlp_classifier_forward.1} parent=1 // pred_fallthru
      _
    %513 = vsyncpa [#allocation3], 1
    %514 = vsyncpa [#allocation5], 1
    %515 = vsyncpa [#allocation8], 1

</llo_original>
